<compile_context>
chip_gen: v6e
topology: v6e:2x2x1
jax: 0.10.0
libtpu: 0.0.40
codegen_flags: <defaults>
</compile_context>

<pallas_src>
import functools
import math

import jax
import jax.numpy as jnp
from jax import lax
from jax.experimental import pallas as pl
from jax.experimental.pallas import tpu as pltpu


def _kl_kernel(x_ref, o_ref, *, rho: float, inv_b: float, const_c: float,
               tb: int, tf: int, true_b: int, true_f: int,
               mask_rows: bool, mask_lanes: bool):
    # Grid = (feature_tiles [parallel], batch_tiles [arbitrary, last]).
    j = pl.program_id(0)        # feature tile index
    i = pl.program_id(1)        # batch tile index (reduction)

    @pl.when(i == 0)
    def _():
        o_ref[...] = jnp.zeros_like(o_ref)

    # (TB, TF) tile -> f32 batch-sum accumulated directly into the output block.
    x = x_ref[...].astype(jnp.float32)
    if mask_rows:
        # Edge batch tile: rows beyond the true batch hold undefined data.
        row = lax.broadcasted_iota(jnp.int32, x.shape, 0)
        x = jnp.where(row + i * tb < true_b, x, 0.0)
    o_ref[...] += jnp.sum(x, axis=0, keepdims=True)

    @pl.when(i == pl.num_programs(1) - 1)
    def _():
        rho_hat = o_ref[...] * inv_b                               # (1, TF)
        kl = (const_c
              - rho * jnp.log(rho_hat)
              - (1.0 - rho) * jnp.log1p(-rho_hat))
        if mask_lanes:
            # Edge feature tile: keep dropped lanes finite (writes past the true
            # F are discarded on write-back, but avoid NaNs for tooling).
            lane = lax.broadcasted_iota(jnp.int32, kl.shape, 1)
            kl = jnp.where(lane + j * tf < true_f, kl, 0.0)
        o_ref[...] = kl                                            # per-feature KL


def kl_divergence_loss(x: jax.Array, rho: float = 0.05) -> jax.Array:
    """Pallas equivalent of KullbackLeiblerDivergenceLoss(rho)(x)."""
    assert 0.0 < rho < 1.0
    b = x.shape[0]
    x2d = x.reshape(b, -1)                      # flatten trailing dims
    f = x2d.shape[1]
    itemsize = jnp.dtype(x2d.dtype).itemsize

    # ---- feature tile: multiple of 128, at most 2048 wide; if a single tile
    # would cover all features, split in two so both v7x TensorCores get work.
    f_pad128 = ((f + 127) // 128) * 128
    tf = min(2048, f_pad128)
    if pl.cdiv(f_pad128, tf) == 1 and f_pad128 >= 256:
        tf = ((f_pad128 // 2 + 127) // 128) * 128
    grid_f = pl.cdiv(f, tf)

    # ---- batch tile: full batch when small (full-extent block, no (8,)
    # constraint); otherwise a multiple of 8 sized so the input block is
    # ~8 MiB (double-buffered ~16 MiB, fits v7x's 64 MiB physical VMEM).
    tb_cap = max(8, min(4096, (8 * 1024 * 1024) // (tf * itemsize)))
    tb_cap -= tb_cap % 8
    tb = b if b <= tb_cap else tb_cap
    grid_b = pl.cdiv(b, tb)

    const_c = rho * math.log(rho) + (1.0 - rho) * math.log(1.0 - rho)

    kernel = functools.partial(
        _kl_kernel, rho=float(rho), inv_b=1.0 / b, const_c=float(const_c),
        tb=tb, tf=tf, true_b=b, true_f=f,
        mask_rows=(b % tb != 0), mask_lanes=(f % tf != 0))

    kl_per_feat = pl.pallas_call(
        kernel,
        out_shape=jax.ShapeDtypeStruct((1, f), jnp.float32),
        grid_spec=pltpu.PrefetchScalarGridSpec(
            num_scalar_prefetch=0,
            grid=(grid_f, grid_b),
            in_specs=[pl.BlockSpec((tb, tf), lambda j, i: (i, j))],
            out_specs=pl.BlockSpec((1, tf), lambda j, i: (0, j)),
        ),
        compiler_params=pltpu.CompilerParams(
            dimension_semantics=("parallel", "arbitrary"),
            vmem_limit_bytes=40 * 1024 * 1024,
        ),
    )(x2d)

    # Finalize in the wrapper: mean over the true F features.
    return jnp.mean(kl_per_feat[0, :])


def _reference(x, rho):
    rho_hat = jnp.mean(x.astype(jnp.float32), axis=0)
    return jnp.mean(rho * jnp.log(rho / rho_hat)
                    + (1.0 - rho) * jnp.log((1.0 - rho) / (1.0 - rho_hat)))


if __name__ == "__main__":
    key = jax.random.PRNGKey(0)
    rho = 0.05

    # Case 1: conv-style activations (B, C, H, W) -> F = 1024 (split into two
    # 512-wide feature tiles so the parallel axis has >= 2 blocks).
    k1, k2 = jax.random.split(key)
    x1 = jax.random.uniform(k1, (2, 4, 16, 16), dtype=jnp.float32,
                            minval=0.05, maxval=0.95)
    out1 = jax.block_until_ready(kl_divergence_loss(x1, rho=rho))
    ref1 = _reference(x1, rho)
    assert jnp.allclose(out1, ref1, rtol=1e-5, atol=1e-6), (out1, ref1)

    # Case 2: hidden-layer activations with non-multiple-of-128 F (exercises the
    # in-kernel ragged feature-lane masking; no wrapper-side padding copy).
    x2 = jax.random.uniform(k2, (8, 300), dtype=jnp.float32,
                            minval=0.05, maxval=0.95)
    out2 = jax.block_until_ready(kl_divergence_loss(x2, rho=rho))
    ref2 = _reference(x2, rho)
    assert jnp.allclose(out2, ref2, rtol=1e-5, atol=1e-6), (out2, ref2)

    print("KERNEL_OK")
</pallas_src>

<mosaic_0001>
module attributes {stable_mosaic.version = 11 : i64} {
  func.func @_kl_kernel(%arg0: i32, %arg1: i32, %arg2: memref<2x512xf32, #tpu.memory_space<vmem>>, %arg3: memref<1x512xf32, #tpu.memory_space<vmem>>) attributes {dimension_semantics = [#tpu.dimension_semantics<parallel>, #tpu.dimension_semantics<arbitrary>], iteration_bounds = array<i64: 2, 1>, scalar_prefetch = 0 : i64, scratch_operands = 0 : i64, tpu.core_type = #tpu.core_type<tc>, window_params = [{transform_indices = @transform_0, window_bounds = array<i64: 2, 512>}, {transform_indices = @transform_1, window_bounds = array<i64: 1, 512>}]} {
    %c0_i32 = arith.constant 0 : i32
    %0 = arith.cmpi eq, %arg1, %c0_i32 : i32
    %1 = arith.extui %0 : i1 to i32
    %c0_i32_0 = arith.constant 0 : i32
    %2 = arith.cmpi ne, %1, %c0_i32_0 : i32
    scf.if %2 {
      %cst_8 = arith.constant 0.000000e+00 : f32
      %12 = vector.broadcast %cst_8 : f32 to vector<1x512xf32>
      %c0_9 = arith.constant 0 : index
      %c0_10 = arith.constant 0 : index
      %13 = vector.load %arg3[%c0_9, %c0_10] : memref<1x512xf32, #tpu.memory_space<vmem>>, vector<1x512xf32>
      tpu.vector_store %arg3[%c0_9, %c0_10], %12 {strides = array<i32>} : memref<1x512xf32, #tpu.memory_space<vmem>>, vector<1x512xf32>,
    } else {
    }
    %c0 = arith.constant 0 : index
    %c0_1 = arith.constant 0 : index
    %3 = vector.load %arg2[%c0, %c0_1] : memref<2x512xf32, #tpu.memory_space<vmem>>, vector<2x512xf32>
    %c0_2 = arith.constant 0 : index
    %c0_3 = arith.constant 0 : index
    %4 = vector.load %arg3[%c0_2, %c0_3] : memref<1x512xf32, #tpu.memory_space<vmem>>, vector<1x512xf32>
    %cst = arith.constant dense<0.000000e+00> : vector<512xf32>
    %5 = vector.multi_reduction <add>, %3, %cst [0] : vector<2x512xf32> to vector<512xf32>
    %6 = vector.shape_cast %5 : vector<512xf32> to vector<1x512xf32>
    %7 = arith.addf %4, %6 : vector<1x512xf32>
    %c0_4 = arith.constant 0 : index
    %c0_5 = arith.constant 0 : index
    %8 = vector.load %arg3[%c0_4, %c0_5] : memref<1x512xf32, #tpu.memory_space<vmem>>, vector<1x512xf32>
    tpu.vector_store %arg3[%c0_4, %c0_5], %7 {strides = array<i32>} : memref<1x512xf32, #tpu.memory_space<vmem>>, vector<1x512xf32>,
    %c0_i32_6 = arith.constant 0 : i32
    %9 = arith.cmpi eq, %arg1, %c0_i32_6 : i32
    %10 = arith.extui %9 : i1 to i32
    %c0_i32_7 = arith.constant 0 : i32
    %11 = arith.cmpi ne, %10, %c0_i32_7 : i32
    scf.if %11 {
      %c0_8 = arith.constant 0 : index
      %c0_9 = arith.constant 0 : index
      %12 = vector.load %arg3[%c0_8, %c0_9] : memref<1x512xf32, #tpu.memory_space<vmem>>, vector<1x512xf32>
      %cst_10 = arith.constant 5.000000e-01 : f32
      %13 = vector.broadcast %cst_10 : f32 to vector<1x512xf32>
      %14 = arith.mulf %12, %13 : vector<1x512xf32>
      %15 = math.log %14 : vector<1x512xf32>
      %cst_11 = arith.constant 5.000000e-02 : f32
      %16 = vector.broadcast %cst_11 : f32 to vector<1x512xf32>
      %17 = arith.mulf %16, %15 : vector<1x512xf32>
      %cst_12 = arith.constant -0.198515236 : f32
      %18 = vector.broadcast %cst_12 : f32 to vector<1x512xf32>
      %19 = arith.subf %18, %17 : vector<1x512xf32>
      %cst_13 = arith.constant 0.000000e+00 : f32
      %20 = vector.broadcast %cst_13 : f32 to vector<1x512xf32>
      %21 = arith.subf %20, %14 : vector<1x512xf32>
      %22 = math.log1p %21 : vector<1x512xf32>
      %cst_14 = arith.constant 0.949999988 : f32
      %23 = vector.broadcast %cst_14 : f32 to vector<1x512xf32>
      %24 = arith.mulf %23, %22 : vector<1x512xf32>
      %25 = arith.subf %19, %24 : vector<1x512xf32>
      %c0_15 = arith.constant 0 : index
      %c0_16 = arith.constant 0 : index
      %26 = vector.load %arg3[%c0_15, %c0_16] : memref<1x512xf32, #tpu.memory_space<vmem>>, vector<1x512xf32>
      tpu.vector_store %arg3[%c0_15, %c0_16], %25 {strides = array<i32>} : memref<1x512xf32, #tpu.memory_space<vmem>>, vector<1x512xf32>,
    } else {
    }
    return
  }
  func.func @transform_0(%arg0: i32, %arg1: i32) -> (i32, i32) {
    %c0_i32 = arith.constant 0 : i32
    return %arg1, %arg0 : i32, i32
  }
  func.func @transform_1(%arg0: i32, %arg1: i32) -> (i32, i32) {
    %c0_i32 = arith.constant 0 : i32
    %c0_i32_0 = arith.constant 0 : i32
    return %c0_i32, %arg0 : i32, i32
  }
}

</mosaic_0001>

<llo_original>
// kernel: tpu_custom_call.1
$region0: #{tpu_custom_call.1}
  #allocation0 [shape = 'u32[]', space=smem, size = 0x4, offset = 0x4, fixed_abs, tag = 'smem constant byte address 0x4 - core index']
  #allocation1 [shape = 'u32[144,128]{1,0:T(1,128)}', space=vmem, size = 0x12000, scoped, tag = 'internal scratch']
  %s0 = inlined_call_operand.hbm [shape: f32[2,1024], index: 0, kind: input, shape index: {}]
  %s1 = inlined_call_operand.hbm [shape: f32[1,1024], index: 1, kind: output, shape index: {}]
  %s2 = sld [smem:[#allocation0]]
  $region49: #{tpu_custom_call.1} parent=0
    _
  %s4 = ssub.s32 1, %s2
  %s5 = scalar_select 0, %s4, %s2
  $region1: #{tpu_custom_call.1} parent=0
    #allocation2 [shape = 'u8[8192]{0}', space=vmem, size = 0x2000, scoped, tag = 'input window, operand 0']
    #allocation3 [shape = 's32[2]{0}', space=sflag, size = 0x8, scoped, tag = 'scoped memory for tpu_custom_call.1']
    #allocation4 [shape = 's32[2]{0}', space=sflag, size = 0x8, scoped, tag = 'scoped memory for tpu_custom_call.1']
    #allocation5 [shape = 'u8[4096]{0}', space=vmem, size = 0x1000, scoped, tag = 'output window, operand 0']
    %6 = vsyncpa [#allocation3], 0
    %s7 = scalar_lea.sflag [#allocation3], 1
    %8 = vsyncpa %s7, 0
    %9 = vsyncpa [#allocation4], 0
    %s10 = scalar_lea.sflag [#allocation4], 1
    %11 = vsyncpa %s10, 0
    loop: start=0, step=1, limit=4
    $region2: #{tpu_custom_call.1} parent=1 // loop_pre_header
      _
    $region3: #{tpu_custom_call.1} parent=1 // loop_header
      %s13 = sphi 0, %s17
      %p14 = scmp.ge.s32.totalorder %s13, 4
      %s20 = sphi 0, %s32
      %s21 = sphi 0, %s28
      %s22 = sphi 0, %s20
      %s23 = sphi 0, %s21
      %s24 = sphi 0, %s22
      %s25 = sphi 0, %s23
      %s37 = sphi 0, %s39
      %s40 = sphi 0, %s37
      %s41 = sphi 0, %s40
      %s57 = sphi 0, %s41
      %s63 = sphi 0, %s65
      %s66 = sphi 0, %s63
      %s67 = sphi 0, %s66
      %s83 = sphi 0, %s67
    $region4: #{tpu_custom_call.1} parent=1 // loop_header_branch
      %16 = sbr.rel (%p14) target = $region8
    $region5: #{tpu_custom_call.1} parent=1 // loop_body
      %s18 = ssub.s32 %s13, 1
      %s19 = ssub.s32 %s13, 2
      %s26 = sadd.s32 1, %s21
      %p27 = scmp.ge.s32.totalorder %s26, 1
      %s28 = scalar_select %p27, 0, %s26
      %s29 = sadd.s32 1, %s20
      %s30 = scalar_select %p27, %s29, %s20
      %p31 = scmp.ge.s32.totalorder %s30, 2
      %s32 = scalar_select %p31, 0, %s30
      %s33 = ssub.s32 %s21, %s28
      %s34 = ssub.s32 %s20, %s32
      %s35 = sor.u32 %s33, %s34
      %p36 = scmp.eq.s32.totalorder %s35, 0
      %s38 = sadd.s32 %s37, 1
      %s39 = scalar_select %p36, %s37, %s38
      %p42 = pneg %p36
      %p43 = scmp.eq.s32.totalorder %s13, 1
      %p44 = por %p42, %p43
      %p45 = scmp.ne.s32.totalorder %s37, %s40
      %p46 = scmp.eq.s32.totalorder %s13, 0
      %p47 = por %p45, %p46
      %p48 = scmp.ne.s32.totalorder %s37, %s40
      %p49 = scmp.eq.s32.totalorder %s18, 1
      %p50 = por %p48, %p49
      %p51 = scmp.ne.s32.totalorder %s40, %s41
      %p52 = scmp.eq.s32.totalorder %s18, 0
      %p53 = por %p51, %p52
      %p54 = scmp.ne.s32.totalorder %s40, %s41
      %p55 = scmp.eq.s32.totalorder %s19, 1
      %p56 = por %p54, %p55
      %p58 = scmp.ne.s32.totalorder %s41, %s57
      %p59 = scmp.eq.s32.totalorder %s19, 0
      %p60 = por %p58, %p59
      %s61 = ssub.s32 %s20, %s32
      %p62 = scmp.eq.s32.totalorder %s61, 0
      %s64 = sadd.s32 %s63, 1
      %s65 = scalar_select %p62, %s63, %s64
      %p68 = pneg %p62
      %p69 = scmp.eq.s32.totalorder %s13, 1
      %p70 = por %p68, %p69
      %p71 = scmp.ne.s32.totalorder %s63, %s66
      %p72 = scmp.eq.s32.totalorder %s13, 0
      %p73 = por %p71, %p72
      %p74 = scmp.ne.s32.totalorder %s63, %s66
      %p75 = scmp.eq.s32.totalorder %s18, 1
      %p76 = por %p74, %p75
      %p77 = scmp.ne.s32.totalorder %s66, %s67
      %p78 = scmp.eq.s32.totalorder %s18, 0
      %p79 = por %p77, %p78
      %p80 = scmp.ne.s32.totalorder %s66, %s67
      %p81 = scmp.eq.s32.totalorder %s19, 1
      %p82 = por %p80, %p81
      %p84 = scmp.ne.s32.totalorder %s67, %s83
      %p85 = scmp.eq.s32.totalorder %s19, 0
      %p86 = por %p84, %p85
      %p87 = scmp.le.s32.totalorder 1, %s13
      %p88 = scmp.lt.s32.totalorder %s13, 3
      %p89 = pnand %p87, %p88
      %p90 = pneg %p89
      // Predicated region
      $region9: #{tpu_custom_call.1} parent=5 // pred_check
        _
      $region10: #{tpu_custom_call.1} parent=5 // pred_check_branch
        %92 = sbr.rel (%p89) target = $region12
      $region11: #{tpu_custom_call.1} parent=5 // pred_region
        %s93 = ssub.s32 %s13, 1
      $region12: #{tpu_custom_call.1} parent=5 // pred_fallthru
        _
      %p94 = scmp.lt.s32.totalorder %s13, 2
      // Predicated region
      $region13: #{tpu_custom_call.1} parent=5 // pred_check
        %p95 = pneg %p94
      $region14: #{tpu_custom_call.1} parent=5 // pred_check_branch
        %97 = sbr.rel (%p95) target = $region16
      $region15: #{tpu_custom_call.1} parent=5 // pred_region
        // Predicated region
        $region17: #{tpu_custom_call.1} parent=15 // pred_check
          %p98 = pneg %p47
        $region18: #{tpu_custom_call.1} parent=15 // pred_check_branch
          %100 = sbr.rel (%p98) target = $region20
        $region19: #{tpu_custom_call.1} parent=15 // pred_region
          %s101 = sand.u32 %s37, 1
          %s102 = scalar_lea.sflag [#allocation3], %s101
          %s103 = sand.u32 %s37, 1
          %s104 = smul.addr %s103, 8
          %s105 = scalar_lea.vmem [#allocation2], %s104
          %s106 = smul.u32 4, %s20
          %s108 = ssub.s32 128, 128
          %109 = vsyncadd %s102, %s108
          %s110 = smul.addr %s21, 8
          %s111 = sadd.s32 %s106, %s110
          %s112 = smul.addr %s111, 32
          %s113 = scalar_lea.hbm %s0, %s112
          %s115 = sshll.u32 %s105, 4
          %s116 = int_to_ptr.vmem [resolvable:$true] %s115
          %118 = dma.hbm_to_vmem [thread:$0]  %s113, 128, %s116, %s102
        $region20: #{tpu_custom_call.1} parent=15 // pred_fallthru
          _
      $region16: #{tpu_custom_call.1} parent=5 // pred_fallthru
        _
      %p119 = scmp.le.s32.totalorder 1, %s13
      %p120 = scmp.lt.s32.totalorder %s13, 3
      %p121 = pnand %p119, %p120
      %p122 = pneg %p121
      // Predicated region
      $region21: #{tpu_custom_call.1} parent=5 // pred_check
        _
      $region22: #{tpu_custom_call.1} parent=5 // pred_check_branch
        %124 = sbr.rel (%p121) target = $region24
      $region23: #{tpu_custom_call.1} parent=5 // pred_region
        %s125 = ssub.s32 %s13, 1
        %s126 = sand.u32 %s40, 1
        %s127 = scalar_lea.sflag [#allocation3], %s126
        %s128 = sand.u32 %s40, 1
        %s129 = smul.addr %s128, 8
        %s130 = scalar_lea.vmem [#allocation2], %s129
        // Predicated region
        $region25: #{tpu_custom_call.1} parent=23 // pred_check
          %p131 = pneg %p53
        $region26: #{tpu_custom_call.1} parent=23 // pred_check_branch
          %133 = sbr.rel (%p131) target = $region28
        $region27: #{tpu_custom_call.1} parent=23 // pred_region
          %134 = dma.done %s127, 128
        $region28: #{tpu_custom_call.1} parent=23 // pred_fallthru
          _
        %s135 = sand.u32 %s40, 1
        %s136 = scalar_lea.sflag [#allocation3], %s135
        %s137 = sand.u32 %s40, 1
        %s138 = smul.addr %s137, 8
        %s139 = scalar_lea.vmem [#allocation2], %s138
        %p140 = pneg %p53
        %p141 = pneg %p50
        %p142 = pneg %p79
        %p143 = pneg %p76
        %s144 = sand.u32 %s66, 1
        %s145 = scalar_lea.sflag [#allocation4], %s144
        %s146 = sand.u32 %s66, 1
        %s147 = smul.addr %s146, 4
        %s148 = scalar_lea.vmem [#allocation5], %s147
        %s149 = smul.u32 4, %s22
        %s150 = smul.u32 4, %s22
        %p151 = scmp.eq.s32.totalorder %s23, 0
        // Predicated region
        $region29: #{tpu_custom_call.1} parent=23 // pred_check
          %p152 = pneg %p151
        $region30: #{tpu_custom_call.1} parent=23 // pred_check_branch
          %154 = sbr.rel (%p152) target = $region32
        $region31: #{tpu_custom_call.1} parent=23 // pred_region
          %v155 = vlaneseq
          %vm156 = vcmp.ge.s32.totalorder %v155, 0
          %vm157 = vcmp.lt.s32.totalorder %v155, 512
          %vm158 = vmand %vm156, %vm157
          %159 = vst.msk [vmem:[%s148] sm:$0xf] %vm158, 0.0
        $region32: #{tpu_custom_call.1} parent=23 // pred_fallthru
          _
        %v160 = vld [vmem:[%s130] sm:$0xff]
        %v161 = vld [vmem:[%s148] sm:$0xf]
        %v163 = vcombine.high %v160, %v160
        %v165 = vunpack.c.l.s4 1983009808
        %v166 = vunpack.c.0.s8 %v165
        %v167 = vlaneseq
        %v168 = vshrl.u32 %v167, 7
        %v169 = vsub.s32 %v166, %v168
        %v170 = vrot.slane %v160, %v169
        %v172 = vunpack.c.l.s4 1983009808
        %v173 = vunpack.c.0.s8 %v172
        %v174 = vlaneseq
        %v175 = vshrl.u32 %v174, 7
        %v176 = vsub.s32 %v173, %v175
        %v177 = vrot.slane %v163, %v176
        %v178 = vcombine.high %v170, %v170
        %v179 = vcombine.high %v177, %v177
        %vm184 = vcmask 1041408
        %v185 = vsel %vm184, %v170, 0.0
        %v186 = vrot.slane %v185, 4
        %v187 = vadd.f32 %v185, %v186
        %v188 = vrot.slane %v187, 2
        %v189 = vadd.f32 %v187, %v188
        %v190 = vrot.slane %v189, 1
        %v191 = vadd.f32 %v189, %v190
        %v192 = vsel %vm184, %v178, 0.0
        %v193 = vrot.slane %v192, 4
        %v194 = vadd.f32 %v192, %v193
        %v195 = vrot.slane %v194, 2
        %v196 = vadd.f32 %v194, %v195
        %v197 = vrot.slane %v196, 1
        %v198 = vadd.f32 %v196, %v197
        %v199 = vsel %vm184, %v177, 0.0
        %v200 = vrot.slane %v199, 4
        %v201 = vadd.f32 %v199, %v200
        %v202 = vrot.slane %v201, 2
        %v203 = vadd.f32 %v201, %v202
        %v204 = vrot.slane %v203, 1
        %v205 = vadd.f32 %v203, %v204
        %v206 = vsel %vm184, %v179, 0.0
        %v207 = vrot.slane %v206, 4
        %v208 = vadd.f32 %v206, %v207
        %v209 = vrot.slane %v208, 2
        %v210 = vadd.f32 %v208, %v209
        %v211 = vrot.slane %v210, 1
        %v212 = vadd.f32 %v210, %v211
        %v217 = vcombine.low %v191, %v198
        %v218 = vcombine.low %v205, %v212
        %v220 = vunpack.c.l.s4 1966171168
        %v221 = vunpack.c.0.s8 %v220
        %v222 = vlaneseq
        %v223 = vshrl.u32 %v222, 7
        %v224 = vsub.s32 %v221, %v223
        %v225 = vrot.slane %v217, %v224
        %v227 = vunpack.c.l.s4 1966171168
        %v228 = vunpack.c.0.s8 %v227
        %v229 = vlaneseq
        %v230 = vshrl.u32 %v229, 7
        %v231 = vsub.s32 %v228, %v230
        %v232 = vrot.slane %v218, %v231
        %v233 = vcombine.low %v225, %v232
        %v235 = vunpack.c.l.s4 1966171168
        %v236 = vunpack.c.0.s8 %v235
        %v237 = vlaneseq
        %v238 = vshrl.u32 %v237, 7
        %v239 = vsub.s32 %v236, %v238
        %v240 = vrot.slane %v233, %v239
        %v242 = vadd.f32 %v161, %v240
        %v243 = vlaneseq
        %vm244 = vcmp.ge.s32.totalorder %v243, 0
        %vm245 = vcmp.lt.s32.totalorder %v243, 512
        %vm246 = vmand %vm244, %vm245
        %247 = vst.msk [vmem:[%s148] sm:$0xf] %vm246, %v242
        // Predicated region
        $region33: #{tpu_custom_call.1} parent=23 // pred_check
          %p248 = pneg %p151
        $region34: #{tpu_custom_call.1} parent=23 // pred_check_branch
          %250 = sbr.rel (%p248) target = $region36
        $region35: #{tpu_custom_call.1} parent=23 // pred_region
          %v251 = vld [vmem:[%s148] sm:$0xf]
          %v252 = vmul.f32 %v251, 0.5
          %v253 = vlog2.pop %v252
          %v254 = vmul.f32 %v253, 0.6931472
          %v255 = vmul.f32 %v254, 0.05
          %v256 = vsub.f32 -0.19851524, %v255
          %v257 = vsub.f32 0.0, %v252
          %v258 = vadd.f32 %v257, 1.0
          %v259 = vlog2.pop %v258
          %v260 = vmul.f32 %v259, 0.6931472
          %v261 = vmul.f32 -0.5, %v257
          %v262 = vadd.f32 %v261, 1.0
          %v263 = vmul.f32 %v262, %v257
          %v264 = vand.u32 2147483647, %v257
          %vm265 = vcmp.lt.f32.partialorder %v264, 0.0004427343
          %v266 = vsel %vm265, %v263, %v260
          %v267 = vmul.f32 %v266, 0.95
          %v268 = vsub.f32 %v256, %v267
          %269 = vst.msk [vmem:[%s148] sm:$0xf] %vm246, %v268
        $region36: #{tpu_custom_call.1} parent=23 // pred_fallthru
          _
        %s270 = sand.u32 %s66, 1
        %s271 = scalar_lea.sflag [#allocation4], %s270
        %s272 = sand.u32 %s66, 1
        %s273 = smul.addr %s272, 4
        %s274 = scalar_lea.vmem [#allocation5], %s273
        // Predicated region
        $region37: #{tpu_custom_call.1} parent=23 // pred_check
          %p275 = pneg %p76
        $region38: #{tpu_custom_call.1} parent=23 // pred_check_branch
          %277 = sbr.rel (%p275) target = $region40
        $region39: #{tpu_custom_call.1} parent=23 // pred_region
          %s278 = smul.u32 4, %s22
          %s280 = ssub.s32 64, 64
          %281 = vsyncadd %s271, %s280
          %s282 = smul.addr %s278, 16
          %s283 = scalar_lea.hbm %s1, %s282
          %s285 = sshll.u32 %s274, 4
          %s286 = int_to_ptr.vmem [resolvable:$true] %s285
          %288 = dma.vmem_to_hbm [thread:$0]  %s286, 64, %s283, %s271
        $region40: #{tpu_custom_call.1} parent=23 // pred_fallthru
          _
      $region24: #{tpu_custom_call.1} parent=5 // pred_fallthru
        _
      %p289 = scmp.le.s32.totalorder 2, %s13
      // Predicated region
      $region41: #{tpu_custom_call.1} parent=5 // pred_check
        %p290 = pneg %p289
      $region42: #{tpu_custom_call.1} parent=5 // pred_check_branch
        %292 = sbr.rel (%p290) target = $region44
      $region43: #{tpu_custom_call.1} parent=5 // pred_region
        %s293 = ssub.s32 %s13, 2
        // Predicated region
        $region45: #{tpu_custom_call.1} parent=43 // pred_check
          %p294 = pneg %p82
        $region46: #{tpu_custom_call.1} parent=43 // pred_check_branch
          %296 = sbr.rel (%p294) target = $region48
        $region47: #{tpu_custom_call.1} parent=43 // pred_region
          %s297 = sand.u32 %s67, 1
          %s298 = scalar_lea.sflag [#allocation4], %s297
          %s299 = sand.u32 %s67, 1
          %s300 = smul.addr %s299, 4
          %s301 = scalar_lea.vmem [#allocation5], %s300
          %302 = dma.done %s298, 64
        $region48: #{tpu_custom_call.1} parent=43 // pred_fallthru
          _
      $region44: #{tpu_custom_call.1} parent=5 // pred_fallthru
        _
    $region6: #{tpu_custom_call.1} parent=1 // loop_footer
      %s17 = sadd.s32 1, %s13
    $region7: #{tpu_custom_call.1} parent=1 // loop_footer_branch
      %12 = sbr.rel target = $region3
    $region8: #{tpu_custom_call.1} parent=1 // loop_exit
      _
    %303 = vsyncpa [#allocation3], 1
    %s304 = scalar_lea.sflag [#allocation3], 1
    %305 = vsyncpa %s304, 1
    %306 = vsyncpa [#allocation4], 1
    %s307 = scalar_lea.sflag [#allocation4], 1
    %308 = vsyncpa %s307, 1

</llo_original>
